<compile_context>
chip_gen: v7x
topology: tpu7x:2x2x1
jax: 0.10.0
libtpu: 0.0.40
codegen_flags: <defaults>
</compile_context>

<pallas_src>
import functools
import math

import jax
import jax.numpy as jnp
from jax.experimental import pallas as pl
from jax.experimental.pallas import tpu as pltpu


# ---------------------------------------------------------------------------
# Fused kernel: full encode + decode chain in one body.
# refs = (enc_w0, enc_b0, ..., enc_w{L-1}, enc_b{L-1},
#         dec_w0, dec_b0, ..., dec_w{L-1}, dec_b{L-1},
#         enc_out_ref, dec_out_ref)
# ---------------------------------------------------------------------------
def _fused_autoencoder_kernel(x_ref, *refs, n_layers, use_activation):
    enc_out_ref = refs[-2]
    dec_out_ref = refs[-1]
    params = refs[:-2]
    enc_params = params[: 2 * n_layers]
    dec_params = params[2 * n_layers:]

    h = x_ref[...].astype(jnp.float32)

    # ---- encode -----------------------------------------------------------
    for i in range(n_layers):
        w = enc_params[2 * i][...]
        b = enc_params[2 * i + 1][...]            # (1, out_dim) -> row broadcast
        h = jnp.dot(h, w, preferred_element_type=jnp.float32) + b
        if use_activation:
            h = jnp.tanh(h)                       # EUP, off the critical slot
    enc_out_ref[...] = h.astype(enc_out_ref.dtype)

    # ---- decode (no activation on the last decode layer) ------------------
    for i in range(n_layers):
        w = dec_params[2 * i][...]
        b = dec_params[2 * i + 1][...]
        h = jnp.dot(h, w, preferred_element_type=jnp.float32) + b
        if use_activation and i != n_layers - 1:
            h = jnp.tanh(h)
    dec_out_ref[...] = h.astype(dec_out_ref.dtype)


def _round_up(x, m):
    return ((x + m - 1) // m) * m


def _cost_estimate(M, layer_shapes, param_bytes, in_bytes, out_bytes,
                   use_activation):
    flops = 2 * M * sum(k * n for k, n in layer_shapes)
    # tanh on every layer output except the last decode layer
    trans = 0
    if use_activation:
        outs = [n for _, n in layer_shapes]
        trans = M * sum(outs[:-1])
    return pl.CostEstimate(
        flops=flops,
        transcendentals=trans,
        bytes_accessed=in_bytes + out_bytes + param_bytes,
    )


# ---------------------------------------------------------------------------
# Wrapper
# ---------------------------------------------------------------------------
def autoencoder_forward(params, embeddings, use_activation=True,
                        batch_tile=4096, gridless_threshold=4096):
    """Returns (encoded, decoded), matching Autoencoder.forward."""
    enc_ws, enc_bs = params["encoders"], params["encoder_bias"]
    dec_ws, dec_bs = params["decoders"], params["decoder_bias"]
    n_layers = len(enc_ws)

    M, K = embeddings.shape
    enc_dim = enc_ws[-1].shape[1]
    dec_dim = dec_ws[-1].shape[1]                 # == entity_dim
    dtype = embeddings.dtype

    # Flatten params into kernel-input order; biases as (1, N) 2-D arrays.
    inputs = [embeddings]
    param_pairs = list(zip(enc_ws, enc_bs)) + list(zip(dec_ws, dec_bs))
    for w, b in param_pairs:
        inputs.append(w)
        inputs.append(b.reshape(1, -1))

    kernel = functools.partial(
        _fused_autoencoder_kernel,
        n_layers=n_layers,
        use_activation=use_activation,
    )

    out_shape = (
        jax.ShapeDtypeStruct((M, enc_dim), dtype),
        jax.ShapeDtypeStruct((M, dec_dim), dtype),
    )

    layer_shapes = [w.shape for w, _ in param_pairs]
    param_bytes = sum(w.size * w.dtype.itemsize + b.size * b.dtype.itemsize
                      for w, b in param_pairs)
    itemsize = jnp.dtype(dtype).itemsize
    cost = _cost_estimate(
        M, layer_shapes, param_bytes,
        in_bytes=M * K * itemsize,
        out_bytes=M * (enc_dim + dec_dim) * itemsize,
        use_activation=use_activation,
    )

    if M <= gridless_threshold:
        # Small/medium batch: single grid-less call, everything VMEM-resident.
        vmem = pl.BlockSpec(memory_space=pltpu.MemorySpace.VMEM)
        enc, dec = pl.pallas_call(
            kernel,
            out_shape=out_shape,
            in_specs=[vmem] * len(inputs),
            out_specs=(vmem, vmem),
            cost_estimate=cost,
        )(*inputs)
    else:
        # Large batch: tile on M only; weights resident across the grid.
        # Keep at least 2 grid steps so the two v7x TensorCores both get work.
        tm = min(batch_tile, _round_up(pl.cdiv(M, 2), 8))
        tm = max(tm, 8)
        grid = (pl.cdiv(M, tm),)

        in_specs = [pl.BlockSpec((tm, K), lambda i: (i, 0))]
        for w, b in param_pairs:
            in_specs.append(pl.BlockSpec(w.shape, lambda i: (0, 0)))
            in_specs.append(pl.BlockSpec((1, b.shape[0]), lambda i: (0, 0)))
        out_specs = (
            pl.BlockSpec((tm, enc_dim), lambda i: (i, 0)),
            pl.BlockSpec((tm, dec_dim), lambda i: (i, 0)),
        )
        # NOTE: at tm=4096 the double-buffered in/out blocks (lane-padded)
        # total ~15 MiB, comfortably inside the default scoped VMEM limit on
        # v5e/v6e/v7x; raise vmem_limit_bytes only if pushing tm past ~8-16k.
        enc, dec = pl.pallas_call(
            kernel,
            out_shape=out_shape,
            grid=grid,
            in_specs=in_specs,
            out_specs=out_specs,
            cost_estimate=cost,
            compiler_params=pltpu.CompilerParams(
                dimension_semantics=("parallel",)),
        )(*inputs)

    return enc, dec


# ---------------------------------------------------------------------------
# Parameter construction (mirrors the PyTorch __init__)
# ---------------------------------------------------------------------------
def xavier_uniform(key, shape, dtype=jnp.float32):
    fan_in, fan_out = shape
    bound = math.sqrt(6.0 / (fan_in + fan_out))
    return jax.random.uniform(key, shape, dtype, minval=-bound, maxval=bound)


def init_autoencoder_params(key, entity_dim, layer_dims, dtype=jnp.float32):
    encoders, decoders, encoder_bias, decoder_bias = [], [], [], []
    out_dim = entity_dim
    for layer_dim in layer_dims:
        in_dim = out_dim
        out_dim = layer_dim
        key, k_e, k_d = jax.random.split(key, 3)
        encoders.append(xavier_uniform(k_e, (in_dim, out_dim), dtype))
        decoders.append(xavier_uniform(k_d, (out_dim, in_dim), dtype))
        encoder_bias.append(jnp.zeros((out_dim,), dtype))
        decoder_bias.append(jnp.zeros((in_dim,), dtype))
    # PyTorch: decoders / decoder_bias are reversed
    decoders = decoders[::-1]
    decoder_bias = decoder_bias[::-1]
    return dict(
        encoders=encoders,
        encoder_bias=encoder_bias,
        decoders=decoders,
        decoder_bias=decoder_bias,
    )


# ---------------------------------------------------------------------------
# Pure-JAX reference for correctness checks
# ---------------------------------------------------------------------------
def reference_forward(params, embeddings, use_activation=True):
    def prop(x, ws, bs, mode):
        n = len(ws)
        for i, (w, b) in enumerate(zip(ws, bs), 1):
            x = x @ w + b
            if use_activation and not (mode == "decode" and i == n):
                x = jnp.tanh(x)
        return x

    enc = prop(embeddings, params["encoders"], params["encoder_bias"], "encode")
    dec = prop(enc, params["decoders"], params["decoder_bias"], "decode")
    return enc, dec


if __name__ == "__main__":
    key = jax.random.PRNGKey(0)
    k_param, k_x, k_xl = jax.random.split(key, 3)

    entity_dim = 32
    layer_dims = [24, 16]

    params = init_autoencoder_params(k_param, entity_dim, layer_dims)

    # ---- small batch (grid-less fused path) -------------------------------
    batch = 8
    embeddings = jax.random.normal(k_x, (batch, entity_dim), jnp.float32)
    encoded, decoded = autoencoder_forward(params, embeddings)
    encoded = jax.block_until_ready(encoded)
    decoded = jax.block_until_ready(decoded)

    enc_ref, dec_ref = reference_forward(params, embeddings)
    assert encoded.shape == (batch, layer_dims[-1])
    assert decoded.shape == (batch, entity_dim)
    assert jnp.allclose(encoded, enc_ref, atol=1e-5, rtol=1e-5)
    assert jnp.allclose(decoded, dec_ref, atol=1e-5, rtol=1e-5)

    # ---- larger batch: force the M-tiled grid path (small tile for test) ---
    batch_l = 512
    embeddings_l = jax.random.normal(k_xl, (batch_l, entity_dim), jnp.float32)
    enc_l, dec_l = autoencoder_forward(params, embeddings_l,
                                       batch_tile=128, gridless_threshold=64)
    enc_l = jax.block_until_ready(enc_l)
    dec_l = jax.block_until_ready(dec_l)

    enc_lr, dec_lr = reference_forward(params, embeddings_l)
    assert enc_l.shape == (batch_l, layer_dims[-1])
    assert dec_l.shape == (batch_l, entity_dim)
    assert jnp.allclose(enc_l, enc_lr, atol=1e-5, rtol=1e-5)
    assert jnp.allclose(dec_l, dec_lr, atol=1e-5, rtol=1e-5)

    print("KERNEL_OK")
</pallas_src>

<mosaic_0001>
module attributes {stable_mosaic.version = 11 : i64} {
  func.func @_fused_autoencoder_kernel(%arg0: memref<8x32xf32, #tpu.memory_space<vmem>>, %arg1: memref<32x24xf32, #tpu.memory_space<vmem>>, %arg2: memref<1x24xf32, #tpu.memory_space<vmem>>, %arg3: memref<24x16xf32, #tpu.memory_space<vmem>>, %arg4: memref<1x16xf32, #tpu.memory_space<vmem>>, %arg5: memref<16x24xf32, #tpu.memory_space<vmem>>, %arg6: memref<1x24xf32, #tpu.memory_space<vmem>>, %arg7: memref<24x32xf32, #tpu.memory_space<vmem>>, %arg8: memref<1x32xf32, #tpu.memory_space<vmem>>, %arg9: memref<8x16xf32, #tpu.memory_space<vmem>>, %arg10: memref<8x32xf32, #tpu.memory_space<vmem>>) attributes {dimension_semantics = [], scalar_prefetch = 0 : i64, scratch_operands = 0 : i64, tpu.core_type = #tpu.core_type<tc>} {
    %c0 = arith.constant 0 : index
    %c0_0 = arith.constant 0 : index
    %0 = vector.load %arg0[%c0, %c0_0] : memref<8x32xf32, #tpu.memory_space<vmem>>, vector<8x32xf32>
    %c0_1 = arith.constant 0 : index
    %c0_2 = arith.constant 0 : index
    %1 = vector.load %arg1[%c0_1, %c0_2] : memref<32x24xf32, #tpu.memory_space<vmem>>, vector<32x24xf32>
    %c0_3 = arith.constant 0 : index
    %c0_4 = arith.constant 0 : index
    %2 = vector.load %arg2[%c0_3, %c0_4] : memref<1x24xf32, #tpu.memory_space<vmem>>, vector<1x24xf32>
    %cst = arith.constant dense<0.000000e+00> : vector<8x24xf32>
    %3 = tpu.matmul %0, %1, %cst {dimension_numbers = #tpu.dot_dimension_numbers<[1], [0], [0], [1], [0, 0, 1, 1], [], []>} : vector<8x32xf32>, vector<32x24xf32>, vector<8x24xf32> -> vector<8x24xf32>
    %4 = vector.broadcast %2 : vector<1x24xf32> to vector<8x24xf32>
    %5 = arith.addf %3, %4 : vector<8x24xf32>
    %6 = math.tanh %5 : vector<8x24xf32>
    %c0_5 = arith.constant 0 : index
    %c0_6 = arith.constant 0 : index
    %7 = vector.load %arg3[%c0_5, %c0_6] : memref<24x16xf32, #tpu.memory_space<vmem>>, vector<24x16xf32>
    %c0_7 = arith.constant 0 : index
    %c0_8 = arith.constant 0 : index
    %8 = vector.load %arg4[%c0_7, %c0_8] : memref<1x16xf32, #tpu.memory_space<vmem>>, vector<1x16xf32>
    %cst_9 = arith.constant dense<0.000000e+00> : vector<8x16xf32>
    %9 = tpu.matmul %6, %7, %cst_9 {dimension_numbers = #tpu.dot_dimension_numbers<[1], [0], [0], [1], [0, 0, 1, 1], [], []>} : vector<8x24xf32>, vector<24x16xf32>, vector<8x16xf32> -> vector<8x16xf32>
    %10 = vector.broadcast %8 : vector<1x16xf32> to vector<8x16xf32>
    %11 = arith.addf %9, %10 : vector<8x16xf32>
    %12 = math.tanh %11 : vector<8x16xf32>
    %c0_10 = arith.constant 0 : index
    %c0_11 = arith.constant 0 : index
    %13 = vector.load %arg9[%c0_10, %c0_11] : memref<8x16xf32, #tpu.memory_space<vmem>>, vector<8x16xf32>
    tpu.vector_store %arg9[%c0_10, %c0_11], %12 {strides = array<i32>} : memref<8x16xf32, #tpu.memory_space<vmem>>, vector<8x16xf32>,
    %c0_12 = arith.constant 0 : index
    %c0_13 = arith.constant 0 : index
    %14 = vector.load %arg5[%c0_12, %c0_13] : memref<16x24xf32, #tpu.memory_space<vmem>>, vector<16x24xf32>
    %c0_14 = arith.constant 0 : index
    %c0_15 = arith.constant 0 : index
    %15 = vector.load %arg6[%c0_14, %c0_15] : memref<1x24xf32, #tpu.memory_space<vmem>>, vector<1x24xf32>
    %cst_16 = arith.constant dense<0.000000e+00> : vector<8x24xf32>
    %16 = tpu.matmul %12, %14, %cst_16 {dimension_numbers = #tpu.dot_dimension_numbers<[1], [0], [0], [1], [0, 0, 1, 1], [], []>} : vector<8x16xf32>, vector<16x24xf32>, vector<8x24xf32> -> vector<8x24xf32>
    %17 = vector.broadcast %15 : vector<1x24xf32> to vector<8x24xf32>
    %18 = arith.addf %16, %17 : vector<8x24xf32>
    %19 = math.tanh %18 : vector<8x24xf32>
    %c0_17 = arith.constant 0 : index
    %c0_18 = arith.constant 0 : index
    %20 = vector.load %arg7[%c0_17, %c0_18] : memref<24x32xf32, #tpu.memory_space<vmem>>, vector<24x32xf32>
    %c0_19 = arith.constant 0 : index
    %c0_20 = arith.constant 0 : index
    %21 = vector.load %arg8[%c0_19, %c0_20] : memref<1x32xf32, #tpu.memory_space<vmem>>, vector<1x32xf32>
    %cst_21 = arith.constant dense<0.000000e+00> : vector<8x32xf32>
    %22 = tpu.matmul %19, %20, %cst_21 {dimension_numbers = #tpu.dot_dimension_numbers<[1], [0], [0], [1], [0, 0, 1, 1], [], []>} : vector<8x24xf32>, vector<24x32xf32>, vector<8x32xf32> -> vector<8x32xf32>
    %23 = vector.broadcast %21 : vector<1x32xf32> to vector<8x32xf32>
    %24 = arith.addf %22, %23 : vector<8x32xf32>
    %c0_22 = arith.constant 0 : index
    %c0_23 = arith.constant 0 : index
    %25 = vector.load %arg10[%c0_22, %c0_23] : memref<8x32xf32, #tpu.memory_space<vmem>>, vector<8x32xf32>
    tpu.vector_store %arg10[%c0_22, %c0_23], %24 {strides = array<i32>} : memref<8x32xf32, #tpu.memory_space<vmem>>, vector<8x32xf32>,
    return
  }
}

</mosaic_0001>

<llo_original>
// kernel: tpu_custom_call.1
$region0: #{tpu_custom_call.1}
  #allocation0 [shape = 'u32[]', space=smem, size = 0x4, offset = 0x4, fixed_abs, tag = 'smem constant byte address 0x4 - core index']
  #allocation1 [shape = 'u32[144,128]{1,0:T(1,128)}', space=vmem, size = 0x12000, scoped, tag = 'internal scratch']
  %s0 = inlined_call_operand.vmem [shape: f32[8,32], index: 0, kind: input, shape index: {}]
  %s1 = inlined_call_operand.vmem [shape: f32[32,24], index: 1, kind: input, shape index: {}]
  %s2 = inlined_call_operand.vmem [shape: f32[1,24], index: 2, kind: input, shape index: {}]
  %s3 = inlined_call_operand.vmem [shape: f32[24,16], index: 3, kind: input, shape index: {}]
  %s4 = inlined_call_operand.vmem [shape: f32[1,16], index: 4, kind: input, shape index: {}]
  %s5 = inlined_call_operand.vmem [shape: f32[16,24], index: 5, kind: input, shape index: {}]
  %s6 = inlined_call_operand.vmem [shape: f32[1,24], index: 6, kind: input, shape index: {}]
  %s7 = inlined_call_operand.vmem [shape: f32[24,32], index: 7, kind: input, shape index: {}]
  %s8 = inlined_call_operand.vmem [shape: f32[1,32], index: 8, kind: input, shape index: {}]
  %s9 = inlined_call_operand.hbm [shape: f32[8,16], index: 9, kind: output, shape index: {0}]
  %s10 = inlined_call_operand.hbm [shape: f32[8,32], index: 10, kind: output, shape index: {1}]
  %11 = xla_tuple %s9, %s10
  %s12 = sld [smem:[#allocation0]]
  $region54: #{tpu_custom_call.1} parent=0
    _
  %s14 = ssub.s32 1, %s12
  %s15 = scalar_select 0, %s14, %s12
  $region1: #{tpu_custom_call.1} parent=0
    #allocation2 [shape = 'u8[4096]{0}', space=vmem, size = 0x1000, scoped, tag = 'output window, operand 0, single buffered']
    #allocation3 [shape = 's32[1]{0}', space=sflag, size = 0x4, scoped, tag = 'scoped memory for tpu_custom_call.1']
    #allocation4 [shape = 'u8[4096]{0}', space=vmem, size = 0x1000, scoped, tag = 'output window, operand 1, single buffered']
    #allocation5 [shape = 's32[1]{0}', space=sflag, size = 0x4, scoped, tag = 'scoped memory for tpu_custom_call.1']
    %16 = vsyncpa [#allocation3], 0
    %17 = vsyncpa [#allocation5], 0
    // Predicated region
    $region2: #{tpu_custom_call.1} parent=1 // pred_check
      _
    $region3: #{tpu_custom_call.1} parent=1 // pred_check_branch
      %19 = sbr.rel (0) target = $region5
    $region4: #{tpu_custom_call.1} parent=1 // pred_region
      _
    $region5: #{tpu_custom_call.1} parent=1 // pred_fallthru
      _
    // Predicated region
    $region6: #{tpu_custom_call.1} parent=1 // pred_check
      _
    $region7: #{tpu_custom_call.1} parent=1 // pred_check_branch
      %21 = sbr.rel (0) target = $region9
    $region8: #{tpu_custom_call.1} parent=1 // pred_region
      _
    $region9: #{tpu_custom_call.1} parent=1 // pred_fallthru
      _
    // Predicated region
    $region10: #{tpu_custom_call.1} parent=1 // pred_check
      _
    $region11: #{tpu_custom_call.1} parent=1 // pred_check_branch
      %23 = sbr.rel (0) target = $region13
    $region12: #{tpu_custom_call.1} parent=1 // pred_region
      _
    $region13: #{tpu_custom_call.1} parent=1 // pred_fallthru
      _
    // Predicated region
    $region14: #{tpu_custom_call.1} parent=1 // pred_check
      _
    $region15: #{tpu_custom_call.1} parent=1 // pred_check_branch
      %25 = sbr.rel (0) target = $region17
    $region16: #{tpu_custom_call.1} parent=1 // pred_region
      _
    $region17: #{tpu_custom_call.1} parent=1 // pred_fallthru
      _
    // Predicated region
    $region18: #{tpu_custom_call.1} parent=1 // pred_check
      _
    $region19: #{tpu_custom_call.1} parent=1 // pred_check_branch
      %27 = sbr.rel (0) target = $region21
    $region20: #{tpu_custom_call.1} parent=1 // pred_region
      _
    $region21: #{tpu_custom_call.1} parent=1 // pred_fallthru
      _
    // Predicated region
    $region22: #{tpu_custom_call.1} parent=1 // pred_check
      _
    $region23: #{tpu_custom_call.1} parent=1 // pred_check_branch
      %29 = sbr.rel (0) target = $region25
    $region24: #{tpu_custom_call.1} parent=1 // pred_region
      _
    $region25: #{tpu_custom_call.1} parent=1 // pred_fallthru
      _
    // Predicated region
    $region26: #{tpu_custom_call.1} parent=1 // pred_check
      _
    $region27: #{tpu_custom_call.1} parent=1 // pred_check_branch
      %31 = sbr.rel (0) target = $region29
    $region28: #{tpu_custom_call.1} parent=1 // pred_region
      _
    $region29: #{tpu_custom_call.1} parent=1 // pred_fallthru
      _
    // Predicated region
    $region30: #{tpu_custom_call.1} parent=1 // pred_check
      _
    $region31: #{tpu_custom_call.1} parent=1 // pred_check_branch
      %33 = sbr.rel (0) target = $region33
    $region32: #{tpu_custom_call.1} parent=1 // pred_region
      _
    $region33: #{tpu_custom_call.1} parent=1 // pred_fallthru
      _
    // Predicated region
    $region34: #{tpu_custom_call.1} parent=1 // pred_check
      _
    $region35: #{tpu_custom_call.1} parent=1 // pred_check_branch
      %35 = sbr.rel (0) target = $region37
    $region36: #{tpu_custom_call.1} parent=1 // pred_region
      _
    $region37: #{tpu_custom_call.1} parent=1 // pred_fallthru
      _
    %v36 = vld [vmem:[%s0] sm:$0xff]
    %v37 = vld [vmem:[%s1] sm:$0xff]
    %v38 = vld [vmem:[%s1 + $0x8] sm:$0xff]
    %v39 = vld [vmem:[%s1 + $0x10] sm:$0xff]
    %v40 = vld [vmem:[%s1 + $0x18] sm:$0xff]
    %v41 = vld [vmem:[%s2] sm:$0x1]
    %v43 = vlaneseq
    %v44 = vshrl.u32 %v43, 7
    %v45 = vsub.s32 0, %v44
    %v46 = vrot.slane %v41, %v45
    %vm48 = vcmask 261120
    %v50 = vsel %vm48, %v36, 0
    %52 = vmatprep.subr.mxu0 0.0
    %53 = vmatpush1.msra.mxu0 %v37
    %54 = vmatprep.subr.mxu0 0.0
    %55 = vmatpush1.msra.mxu0 %v38
    %56 = vmatprep.subr.mxu0 0.0
    %57 = vmatpush1.msra.mxu0 %v39
    %58 = vmatprep.subr.mxu0 0.0
    %59 = vmatpush1.msra.mxu0 %v40
    %60 = vmatprep.subr.mxu0 0.0
    %61 = vmatpush1.msra.mxu0 0.0
    %62 = vmatprep.subr.mxu0 0.0
    %63 = vmatpush1.msra.mxu0 0.0
    %64 = vmatprep.subr.mxu0 0.0
    %65 = vmatpush1.msra.mxu0 0.0
    %66 = vmatprep.subr.mxu0 0.0
    %67 = vmatpush1.msra.mxu0 0.0
    %68 = vmatprep.subr.mxu0 0.0
    %69 = vmatpush1.msra.mxu0 0.0
    %70 = vmatprep.subr.mxu0 0.0
    %71 = vmatpush1.msra.mxu0 0.0
    %72 = vmatprep.subr.mxu0 0.0
    %73 = vmatpush1.msra.mxu0 0.0
    %74 = vmatprep.subr.mxu0 0.0
    %75 = vmatpush1.msra.mxu0 0.0
    %76 = vmatprep.subr.mxu0 0.0
    %77 = vmatpush1.msra.mxu0 0.0
    %78 = vmatprep.subr.mxu0 0.0
    %79 = vmatpush1.msra.mxu0 0.0
    %80 = vmatprep.subr.mxu0 0.0
    %81 = vmatpush1.msra.mxu0 0.0
    %82 = vmatprep.subr.mxu0 0.0
    %83 = vmatpush1.msra.mxu0 0.0
    %84 = vmatprep.subr.mxu0 0.0
    %85 = vmatpush1.msra.mxu0 0.0
    %86 = vmatprep.subr.mxu0 0.0
    %87 = vmatpush1.msra.mxu0 0.0
    %88 = vmatprep.subr.mxu0 0.0
    %89 = vmatpush1.msra.mxu0 0.0
    %90 = vmatprep.subr.mxu0 0.0
    %91 = vmatpush1.msra.mxu0 0.0
    %92 = vmatprep.subr.mxu0 0.0
    %93 = vmatpush1.msra.mxu0 0.0
    %94 = vmatprep.subr.mxu0 0.0
    %95 = vmatpush1.msra.mxu0 0.0
    %96 = vmatprep.subr.mxu0 0.0
    %97 = vmatpush1.msra.mxu0 0.0
    %98 = vmatprep.subr.mxu0 0.0
    %99 = vmatpush1.msra.mxu0 0.0
    %100 = vmatprep.subr.mxu0 0.0
    %101 = vmatpush1.msra.mxu0 0.0
    %102 = vmatprep.subr.mxu0 0.0
    %103 = vmatpush1.msra.mxu0 0.0
    %104 = vmatprep.subr.mxu0 0.0
    %105 = vmatpush1.msra.mxu0 0.0
    %106 = vmatprep.subr.mxu0 0.0
    %107 = vmatpush1.msra.mxu0 0.0
    %108 = vmatprep.subr.mxu0 0.0
    %109 = vmatpush1.msra.mxu0 0.0
    %110 = vmatprep.subr.mxu0 0.0
    %111 = vmatpush1.msra.mxu0 0.0
    %112 = vmatprep.subr.mxu0 0.0
    %113 = vmatpush1.msra.mxu0 0.0
    %114 = vmatprep.subr.mxu0 0.0
    %115 = vmatpush1.msra.mxu0 0.0
    %116 = vmatprep.mubr.f32.mxu0 0.0
    %117 = vmatmul.mubr.f32.gmra.mrb[0].mxu0 %v50
    %v118 = vpop.f32.mrb[0].mxu0
    %v119 = vadd.f32 %v46, %v118
    %v120 = vpop.f32.mrb[0].mxu0
    %121 = vdwg.mxu0
    %v122 = vtanh.pop %v119
    %v123 = vld [vmem:[%s3] sm:$0xff]
    %v124 = vld [vmem:[%s3 + $0x8] sm:$0xff]
    %v125 = vld [vmem:[%s3 + $0x10] sm:$0xff]
    %v126 = vld [vmem:[%s4] sm:$0x1]
    %v128 = vlaneseq
    %v129 = vshrl.u32 %v128, 7
    %v130 = vsub.s32 0, %v129
    %v131 = vrot.slane %v126, %v130
    %vm133 = vcmask 195584
    %v135 = vsel %vm133, %v122, 0
    %137 = vmatprep.subr.mxu0 0.0
    %138 = vmatpush1.msra.mxu0 %v123
    %139 = vmatprep.subr.mxu0 0.0
    %140 = vmatpush1.msra.mxu0 %v124
    %141 = vmatprep.subr.mxu0 0.0
    %142 = vmatpush1.msra.mxu0 %v125
    %143 = vmatprep.subr.mxu0 0.0
    %144 = vmatpush1.msra.mxu0 0.0
    %145 = vmatprep.subr.mxu0 0.0
    %146 = vmatpush1.msra.mxu0 0.0
    %147 = vmatprep.subr.mxu0 0.0
    %148 = vmatpush1.msra.mxu0 0.0
    %149 = vmatprep.subr.mxu0 0.0
    %150 = vmatpush1.msra.mxu0 0.0
    %151 = vmatprep.subr.mxu0 0.0
    %152 = vmatpush1.msra.mxu0 0.0
    %153 = vmatprep.subr.mxu0 0.0
    %154 = vmatpush1.msra.mxu0 0.0
    %155 = vmatprep.subr.mxu0 0.0
    %156 = vmatpush1.msra.mxu0 0.0
    %157 = vmatprep.subr.mxu0 0.0
    %158 = vmatpush1.msra.mxu0 0.0
    %159 = vmatprep.subr.mxu0 0.0
    %160 = vmatpush1.msra.mxu0 0.0
    %161 = vmatprep.subr.mxu0 0.0
    %162 = vmatpush1.msra.mxu0 0.0
    %163 = vmatprep.subr.mxu0 0.0
    %164 = vmatpush1.msra.mxu0 0.0
    %165 = vmatprep.subr.mxu0 0.0
    %166 = vmatpush1.msra.mxu0 0.0
    %167 = vmatprep.subr.mxu0 0.0
    %168 = vmatpush1.msra.mxu0 0.0
    %169 = vmatprep.subr.mxu0 0.0
    %170 = vmatpush1.msra.mxu0 0.0
    %171 = vmatprep.subr.mxu0 0.0
    %172 = vmatpush1.msra.mxu0 0.0
    %173 = vmatprep.subr.mxu0 0.0
    %174 = vmatpush1.msra.mxu0 0.0
    %175 = vmatprep.subr.mxu0 0.0
    %176 = vmatpush1.msra.mxu0 0.0
    %177 = vmatprep.subr.mxu0 0.0
    %178 = vmatpush1.msra.mxu0 0.0
    %179 = vmatprep.subr.mxu0 0.0
    %180 = vmatpush1.msra.mxu0 0.0
    %181 = vmatprep.subr.mxu0 0.0
    %182 = vmatpush1.msra.mxu0 0.0
    %183 = vmatprep.subr.mxu0 0.0
    %184 = vmatpush1.msra.mxu0 0.0
    %185 = vmatprep.subr.mxu0 0.0
    %186 = vmatpush1.msra.mxu0 0.0
    %187 = vmatprep.subr.mxu0 0.0
    %188 = vmatpush1.msra.mxu0 0.0
    %189 = vmatprep.subr.mxu0 0.0
    %190 = vmatpush1.msra.mxu0 0.0
    %191 = vmatprep.subr.mxu0 0.0
    %192 = vmatpush1.msra.mxu0 0.0
    %193 = vmatprep.subr.mxu0 0.0
    %194 = vmatpush1.msra.mxu0 0.0
    %195 = vmatprep.subr.mxu0 0.0
    %196 = vmatpush1.msra.mxu0 0.0
    %197 = vmatprep.subr.mxu0 0.0
    %198 = vmatpush1.msra.mxu0 0.0
    %199 = vmatprep.subr.mxu0 0.0
    %200 = vmatpush1.msra.mxu0 0.0
    %201 = vmatprep.mubr.f32.mxu0 0.0
    %202 = vmatmul.mubr.f32.gmra.mrb[0].mxu0 %v135
    %v203 = vpop.f32.mrb[0].mxu0
    %v204 = vadd.f32 %v131, %v203
    %v205 = vpop.f32.mrb[0].mxu0
    %206 = vdwg.mxu0
    %v207 = vtanh.pop %v204
    %vm208 = vcmask 130048
    %209 = vst.msk [vmem:[#allocation2] sm:$0xff] %vm208, %v207
    %v210 = vld [vmem:[%s5] sm:$0xff]
    %v211 = vld [vmem:[%s5 + $0x8] sm:$0xff]
    %v212 = vld [vmem:[%s6] sm:$0x1]
    %v214 = vlaneseq
    %v215 = vshrl.u32 %v214, 7
    %v216 = vsub.s32 0, %v215
    %v217 = vrot.slane %v212, %v216
    %v220 = vsel %vm208, %v207, 0
    %222 = vmatprep.subr.mxu0 0.0
    %223 = vmatpush1.msra.mxu0 %v210
    %224 = vmatprep.subr.mxu0 0.0
    %225 = vmatpush1.msra.mxu0 %v211
    %226 = vmatprep.subr.mxu0 0.0
    %227 = vmatpush1.msra.mxu0 0.0
    %228 = vmatprep.subr.mxu0 0.0
    %229 = vmatpush1.msra.mxu0 0.0
    %230 = vmatprep.subr.mxu0 0.0
    %231 = vmatpush1.msra.mxu0 0.0
    %232 = vmatprep.subr.mxu0 0.0
    %233 = vmatpush1.msra.mxu0 0.0
    %234 = vmatprep.subr.mxu0 0.0
    %235 = vmatpush1.msra.mxu0 0.0
    %236 = vmatprep.subr.mxu0 0.0
    %237 = vmatpush1.msra.mxu0 0.0
    %238 = vmatprep.subr.mxu0 0.0
    %239 = vmatpush1.msra.mxu0 0.0
    %240 = vmatprep.subr.mxu0 0.0
    %241 = vmatpush1.msra.mxu0 0.0
    %242 = vmatprep.subr.mxu0 0.0
    %243 = vmatpush1.msra.mxu0 0.0
    %244 = vmatprep.subr.mxu0 0.0
    %245 = vmatpush1.msra.mxu0 0.0
    %246 = vmatprep.subr.mxu0 0.0
    %247 = vmatpush1.msra.mxu0 0.0
    %248 = vmatprep.subr.mxu0 0.0
    %249 = vmatpush1.msra.mxu0 0.0
    %250 = vmatprep.subr.mxu0 0.0
    %251 = vmatpush1.msra.mxu0 0.0
    %252 = vmatprep.subr.mxu0 0.0
    %253 = vmatpush1.msra.mxu0 0.0
    %254 = vmatprep.subr.mxu0 0.0
    %255 = vmatpush1.msra.mxu0 0.0
    %256 = vmatprep.subr.mxu0 0.0
    %257 = vmatpush1.msra.mxu0 0.0
    %258 = vmatprep.subr.mxu0 0.0
    %259 = vmatpush1.msra.mxu0 0.0
    %260 = vmatprep.subr.mxu0 0.0
    %261 = vmatpush1.msra.mxu0 0.0
    %262 = vmatprep.subr.mxu0 0.0
    %263 = vmatpush1.msra.mxu0 0.0
    %264 = vmatprep.subr.mxu0 0.0
    %265 = vmatpush1.msra.mxu0 0.0
    %266 = vmatprep.subr.mxu0 0.0
    %267 = vmatpush1.msra.mxu0 0.0
    %268 = vmatprep.subr.mxu0 0.0
    %269 = vmatpush1.msra.mxu0 0.0
    %270 = vmatprep.subr.mxu0 0.0
    %271 = vmatpush1.msra.mxu0 0.0
    %272 = vmatprep.subr.mxu0 0.0
    %273 = vmatpush1.msra.mxu0 0.0
    %274 = vmatprep.subr.mxu0 0.0
    %275 = vmatpush1.msra.mxu0 0.0
    %276 = vmatprep.subr.mxu0 0.0
    %277 = vmatpush1.msra.mxu0 0.0
    %278 = vmatprep.subr.mxu0 0.0
    %279 = vmatpush1.msra.mxu0 0.0
    %280 = vmatprep.subr.mxu0 0.0
    %281 = vmatpush1.msra.mxu0 0.0
    %282 = vmatprep.subr.mxu0 0.0
    %283 = vmatpush1.msra.mxu0 0.0
    %284 = vmatprep.subr.mxu0 0.0
    %285 = vmatpush1.msra.mxu0 0.0
    %286 = vmatprep.mubr.f32.mxu0 0.0
    %287 = vmatmul.mubr.f32.gmra.mrb[0].mxu0 %v220
    %v288 = vpop.f32.mrb[0].mxu0
    %v289 = vadd.f32 %v217, %v288
    %v290 = vpop.f32.mrb[0].mxu0
    %291 = vdwg.mxu0
    %v292 = vtanh.pop %v289
    %v293 = vld [vmem:[%s7] sm:$0xff]
    %v294 = vld [vmem:[%s7 + $0x8] sm:$0xff]
    %v295 = vld [vmem:[%s7 + $0x10] sm:$0xff]
    %v296 = vld [vmem:[%s8] sm:$0x1]
    %v298 = vlaneseq
    %v299 = vshrl.u32 %v298, 7
    %v300 = vsub.s32 0, %v299
    %v301 = vrot.slane %v296, %v300
    %v304 = vsel %vm133, %v292, 0
    %306 = vmatprep.subr.mxu0 0.0
    %307 = vmatpush1.msra.mxu0 %v293
    %308 = vmatprep.subr.mxu0 0.0
    %309 = vmatpush1.msra.mxu0 %v294
    %310 = vmatprep.subr.mxu0 0.0
    %311 = vmatpush1.msra.mxu0 %v295
    %312 = vmatprep.subr.mxu0 0.0
    %313 = vmatpush1.msra.mxu0 0.0
    %314 = vmatprep.subr.mxu0 0.0
    %315 = vmatpush1.msra.mxu0 0.0
    %316 = vmatprep.subr.mxu0 0.0
    %317 = vmatpush1.msra.mxu0 0.0
    %318 = vmatprep.subr.mxu0 0.0
    %319 = vmatpush1.msra.mxu0 0.0
    %320 = vmatprep.subr.mxu0 0.0
    %321 = vmatpush1.msra.mxu0 0.0
    %322 = vmatprep.subr.mxu0 0.0
    %323 = vmatpush1.msra.mxu0 0.0
    %324 = vmatprep.subr.mxu0 0.0
    %325 = vmatpush1.msra.mxu0 0.0
    %326 = vmatprep.subr.mxu0 0.0
    %327 = vmatpush1.msra.mxu0 0.0
    %328 = vmatprep.subr.mxu0 0.0
    %329 = vmatpush1.msra.mxu0 0.0
    %330 = vmatprep.subr.mxu0 0.0
    %331 = vmatpush1.msra.mxu0 0.0
    %332 = vmatprep.subr.mxu0 0.0
    %333 = vmatpush1.msra.mxu0 0.0
    %334 = vmatprep.subr.mxu0 0.0
    %335 = vmatpush1.msra.mxu0 0.0
    %336 = vmatprep.subr.mxu0 0.0
    %337 = vmatpush1.msra.mxu0 0.0
    %338 = vmatprep.subr.mxu0 0.0
    %339 = vmatpush1.msra.mxu0 0.0
    %340 = vmatprep.subr.mxu0 0.0
    %341 = vmatpush1.msra.mxu0 0.0
    %342 = vmatprep.subr.mxu0 0.0
    %343 = vmatpush1.msra.mxu0 0.0
    %344 = vmatprep.subr.mxu0 0.0
    %345 = vmatpush1.msra.mxu0 0.0
    %346 = vmatprep.subr.mxu0 0.0
    %347 = vmatpush1.msra.mxu0 0.0
    %348 = vmatprep.subr.mxu0 0.0
    %349 = vmatpush1.msra.mxu0 0.0
    %350 = vmatprep.subr.mxu0 0.0
    %351 = vmatpush1.msra.mxu0 0.0
    %352 = vmatprep.subr.mxu0 0.0
    %353 = vmatpush1.msra.mxu0 0.0
    %354 = vmatprep.subr.mxu0 0.0
    %355 = vmatpush1.msra.mxu0 0.0
    %356 = vmatprep.subr.mxu0 0.0
    %357 = vmatpush1.msra.mxu0 0.0
    %358 = vmatprep.subr.mxu0 0.0
    %359 = vmatpush1.msra.mxu0 0.0
    %360 = vmatprep.subr.mxu0 0.0
    %361 = vmatpush1.msra.mxu0 0.0
    %362 = vmatprep.subr.mxu0 0.0
    %363 = vmatpush1.msra.mxu0 0.0
    %364 = vmatprep.subr.mxu0 0.0
    %365 = vmatpush1.msra.mxu0 0.0
    %366 = vmatprep.subr.mxu0 0.0
    %367 = vmatpush1.msra.mxu0 0.0
    %368 = vmatprep.subr.mxu0 0.0
    %369 = vmatpush1.msra.mxu0 0.0
    %370 = vmatprep.mubr.f32.mxu0 0.0
    %371 = vmatmul.mubr.f32.gmra.mrb[0].mxu0 %v304
    %v372 = vpop.f32.mrb[0].mxu0
    %v373 = vadd.f32 %v301, %v372
    %v374 = vpop.f32.mrb[0].mxu0
    %375 = vdwg.mxu0
    %376 = vst.msk [vmem:[#allocation4] sm:$0xff] %vm48, %v373
    // Predicated region
    $region38: #{tpu_custom_call.1} parent=1 // pred_check
      _
    $region39: #{tpu_custom_call.1} parent=1 // pred_check_branch
      %378 = sbr.rel (0) target = $region41
    $region40: #{tpu_custom_call.1} parent=1 // pred_region
      %s380 = ssub.s32 128, 128
      %381 = vsyncadd [#allocation3], %s380
      %s383 = sshll.u32 [#allocation2], 4
      %s384 = int_to_ptr.vmem [resolvable:$true] %s383
      %386 = dma.vmem_to_hbm [thread:$0]  %s384, 128, %s9, [#allocation3]
    $region41: #{tpu_custom_call.1} parent=1 // pred_fallthru
      _
    // Predicated region
    $region42: #{tpu_custom_call.1} parent=1 // pred_check
      _
    $region43: #{tpu_custom_call.1} parent=1 // pred_check_branch
      %388 = sbr.rel (0) target = $region45
    $region44: #{tpu_custom_call.1} parent=1 // pred_region
      %s390 = ssub.s32 128, 128
      %391 = vsyncadd [#allocation5], %s390
      %s393 = sshll.u32 [#allocation4], 4
      %s394 = int_to_ptr.vmem [resolvable:$true] %s393
      %396 = dma.vmem_to_hbm [thread:$0]  %s394, 128, %s10, [#allocation5]
    $region45: #{tpu_custom_call.1} parent=1 // pred_fallthru
      _
    // Predicated region
    $region46: #{tpu_custom_call.1} parent=1 // pred_check
      _
    $region47: #{tpu_custom_call.1} parent=1 // pred_check_branch
      %398 = sbr.rel (0) target = $region49
    $region48: #{tpu_custom_call.1} parent=1 // pred_region
      %399 = dma.done [#allocation3], 128
    $region49: #{tpu_custom_call.1} parent=1 // pred_fallthru
      _
    // Predicated region
    $region50: #{tpu_custom_call.1} parent=1 // pred_check
      _
    $region51: #{tpu_custom_call.1} parent=1 // pred_check_branch
      %401 = sbr.rel (0) target = $region53
    $region52: #{tpu_custom_call.1} parent=1 // pred_region
      %402 = dma.done [#allocation5], 128
    $region53: #{tpu_custom_call.1} parent=1 // pred_fallthru
      _
    %403 = vsyncpa [#allocation3], 1
    %404 = vsyncpa [#allocation5], 1

</llo_original>
